<compile_context>
chip_gen: v5e
topology: v5e:2x2
jax: 0.10.0
libtpu: 0.0.40
codegen_flags: <defaults>
</compile_context>

<pallas_src>
import jax
import jax.numpy as jnp
from jax import lax
from jax.experimental import pallas as pl
from jax.experimental.pallas import tpu as pltpu


def _attention_kernel(xq_ref, xkv_ref, wqkv_ref, o_ref):
    """One (batch, q-tile) grid step of causal single-head attention.

    xq_ref   : (TQ, C)    rows of x for this q tile               (VMEM)
    xkv_ref  : (T,  C)    full sequence of x for this batch       (VMEM)
    wqkv_ref : (C, 3*Hp)  pre-transposed [q | k | v] weights, each
                          segment padded to Hp = 128 lanes        (VMEM, resident)
    o_ref    : (TQ, Hp)   output tile (lane-dense, padded head)   (VMEM)
    """
    qi = pl.program_id(1)
    TQ = xq_ref.shape[0]
    T = xkv_ref.shape[0]
    Hp = wqkv_ref.shape[1] // 3

    dt = xq_ref.dtype
    xq = xq_ref[...]                                  # (TQ, C)
    xkv = xkv_ref[...]                                # (T,  C)
    # 128-lane-aligned slices: zero-cost views of the resident weight tile.
    wq = wqkv_ref[:, 0 * Hp:1 * Hp]
    wk = wqkv_ref[:, 1 * Hp:2 * Hp]
    wv = wqkv_ref[:, 2 * Hp:3 * Hp]

    hi = lax.Precision.HIGHEST
    # Projections (MXU), f32 accumulation; operands kept in the input dtype.
    q = jnp.dot(xq, wq, preferred_element_type=jnp.float32,
                precision=hi).astype(dt)              # (TQ, Hp)
    k = jnp.dot(xkv, wk, preferred_element_type=jnp.float32,
                precision=hi).astype(dt)              # (T,  Hp)
    v = jnp.dot(xkv, wv, preferred_element_type=jnp.float32,
                precision=hi).astype(dt)              # (T,  Hp)

    # Scores q @ k^T: contract the head dim directly (no XLU transpose).
    # NOTE: no 1/sqrt(head_size) scale, exactly as in the reference module.
    wei = lax.dot_general(q, k, (((1,), (1,)), ((), ())),
                          preferred_element_type=jnp.float32,
                          precision=hi)               # (TQ, T)

    # Per-tile causal mask: global row = qi*TQ + r, column = c; allow c <= row.
    # Large finite negative instead of -inf (NaN-safe if a row were all-masked).
    row = lax.broadcasted_iota(jnp.int32, (TQ, T), 0) + qi * TQ
    col = lax.broadcasted_iota(jnp.int32, (TQ, T), 1)
    wei = jnp.where(col <= row, wei, jnp.float32(-1e30))

    # Numerically stable softmax in f32 (v5e has no bf16 VPU/EUP path).
    m = jnp.max(wei, axis=-1, keepdims=True)
    e = jnp.exp(wei - m)
    denom = jnp.sum(e, axis=-1, keepdims=True)
    p = e / denom                                     # exact division

    out = jnp.dot(p.astype(dt), v, preferred_element_type=jnp.float32,
                  precision=hi)                       # (TQ, Hp)
    o_ref[...] = out.astype(o_ref.dtype)


def attention(x, w_key, w_query, w_value):
    """x: (B, T, C); w_*: (H, C) PyTorch nn.Linear weights (bias=False).

    Returns (B, T, H), matching Attention.forward.
    """
    B, T, C = x.shape
    H = w_key.shape[0]

    LANES = 128
    Hp = ((H + LANES - 1) // LANES) * LANES

    def pad_t(w):  # (H, C) -> (C, Hp), zero-padded lanes
        return jnp.pad(w.T, ((0, 0), (0, Hp - H)))

    # [q | k | v] along lanes, each segment 128-lane aligned (order q, k, v).
    w_qkv = jnp.concatenate([pad_t(w_query), pad_t(w_key), pad_t(w_value)],
                            axis=1)                   # (C, 3*Hp)

    # q-tile size: whole sequence for short T; 256-row tiles once T is a large
    # multiple of 256 (keeps the (8,128) block constraint satisfied).
    TQ = 256 if (T > 256 and T % 256 == 0) else T
    n_q = T // TQ

    out_p = pl.pallas_call(
        _attention_kernel,
        out_shape=jax.ShapeDtypeStruct((B, T, Hp), x.dtype),
        grid=(B, n_q),
        in_specs=[
            pl.BlockSpec((None, TQ, C), lambda b, qi: (b, qi, 0)),  # x rows for q
            pl.BlockSpec((None, T, C), lambda b, qi: (b, 0, 0)),    # x full seq (k, v)
            pl.BlockSpec((C, 3 * Hp), lambda b, qi: (0, 0)),        # weights, resident
        ],
        out_specs=pl.BlockSpec((None, TQ, Hp), lambda b, qi: (b, qi, 0)),
        compiler_params=pltpu.CompilerParams(
            dimension_semantics=("parallel", "parallel")),
    )(x, x, w_qkv)

    # Strip the lane padding; layout plumbing outside the kernel is cheap XLA.
    return out_p[..., :H]


def attention_ref(x, w_key, w_query, w_value):
    """Pure-JAX reference matching the PyTorch forward (f32, highest precision)."""
    hi = lax.Precision.HIGHEST
    k = jnp.einsum("btc,hc->bth", x, w_key, precision=hi)
    q = jnp.einsum("btc,hc->bth", x, w_query, precision=hi)
    v = jnp.einsum("btc,hc->bth", x, w_value, precision=hi)
    wei = jnp.einsum("bth,bsh->bts", q, k, precision=hi)
    T = x.shape[1]
    mask = jnp.tril(jnp.ones((T, T), dtype=bool))
    wei = jnp.where(mask[None], wei, -jnp.inf)
    wei = jax.nn.softmax(wei, axis=-1)
    return jnp.einsum("bts,bsh->bth", wei, v, precision=hi)


if __name__ == "__main__":
    # Small shapes consistent with the module:
    #   block_size (T) = 8, n_embd (C) = 32, head_size (H) = 16, batch B = 2.
    B, T, C, H = 2, 8, 32, 16

    key = jax.random.PRNGKey(0)
    kx, kk, kq, kv = jax.random.split(key, 4)

    x = jax.random.normal(kx, (B, T, C), dtype=jnp.float32)
    # Deterministic "Kaiming-uniform-like" init for nn.Linear weights (H, C).
    bound = 1.0 / (C ** 0.5)
    w_key = jax.random.uniform(kk, (H, C), jnp.float32, -bound, bound)
    w_query = jax.random.uniform(kq, (H, C), jnp.float32, -bound, bound)
    w_value = jax.random.uniform(kv, (H, C), jnp.float32, -bound, bound)

    out = attention(x, w_key, w_query, w_value)
    out = jax.block_until_ready(out)

    ref = attention_ref(x, w_key, w_query, w_value)
    assert out.shape == (B, T, H)
    assert jnp.allclose(out, ref, atol=1e-4, rtol=1e-4), "mismatch vs reference"

    print("KERNEL_OK")
</pallas_src>

<mosaic_0001>
module attributes {stable_mosaic.version = 11 : i64} {
  func.func @_attention_kernel(%arg0: i32, %arg1: i32, %arg2: memref<1x8x32xf32, #tpu.memory_space<vmem>>, %arg3: memref<1x8x32xf32, #tpu.memory_space<vmem>>, %arg4: memref<32x384xf32, #tpu.memory_space<vmem>>, %arg5: memref<1x8x128xf32, #tpu.memory_space<vmem>>) attributes {dimension_semantics = [#tpu.dimension_semantics<parallel>, #tpu.dimension_semantics<parallel>], iteration_bounds = array<i64: 2, 1>, scalar_prefetch = 0 : i64, scratch_operands = 0 : i64, tpu.core_type = #tpu.core_type<tc>, window_params = [{transform_indices = @transform_0, window_bounds = array<i64: 1, 8, 32>}, {transform_indices = @transform_1, window_bounds = array<i64: 1, 8, 32>}, {pipeline_mode = #tpu.pipeline_mode<synchronous>, transform_indices = @transform_2, window_bounds = array<i64: 32, 384>}, {transform_indices = @transform_3, window_bounds = array<i64: 1, 8, 128>}]} {
    %c0 = arith.constant 0 : index
    %c0_0 = arith.constant 0 : index
    %c0_1 = arith.constant 0 : index
    %0 = vector.load %arg2[%c0, %c0_0, %c0_1] : memref<1x8x32xf32, #tpu.memory_space<vmem>>, vector<1x8x32xf32>
    %1 = vector.shape_cast %0 : vector<1x8x32xf32> to vector<8x32xf32>
    %c0_2 = arith.constant 0 : index
    %c0_3 = arith.constant 0 : index
    %c0_4 = arith.constant 0 : index
    %2 = vector.load %arg3[%c0_2, %c0_3, %c0_4] : memref<1x8x32xf32, #tpu.memory_space<vmem>>, vector<1x8x32xf32>
    %3 = vector.shape_cast %2 : vector<1x8x32xf32> to vector<8x32xf32>
    %c0_5 = arith.constant 0 : index
    %c0_6 = arith.constant 0 : index
    %4 = vector.load %arg4[%c0_5, %c0_6] : memref<32x384xf32, #tpu.memory_space<vmem>>, vector<32x128xf32>
    %c0_7 = arith.constant 0 : index
    %c128 = arith.constant 128 : index
    %5 = vector.load %arg4[%c0_7, %c128] : memref<32x384xf32, #tpu.memory_space<vmem>>, vector<32x128xf32>
    %c0_8 = arith.constant 0 : index
    %c256 = arith.constant 256 : index
    %6 = vector.load %arg4[%c0_8, %c256] : memref<32x384xf32, #tpu.memory_space<vmem>>, vector<32x128xf32>
    %cst = arith.constant dense<0.000000e+00> : vector<8x128xf32>
    %7 = tpu.matmul %1, %4, %cst {dimension_numbers = #tpu.dot_dimension_numbers<[1], [0], [0], [1], [0, 0, 1, 1], [], []>, precision = #tpu.contract_precision<fp32>} : vector<8x32xf32>, vector<32x128xf32>, vector<8x128xf32> -> vector<8x128xf32>
    %cst_9 = arith.constant dense<0.000000e+00> : vector<8x128xf32>
    %8 = tpu.matmul %3, %5, %cst_9 {dimension_numbers = #tpu.dot_dimension_numbers<[1], [0], [0], [1], [0, 0, 1, 1], [], []>, precision = #tpu.contract_precision<fp32>} : vector<8x32xf32>, vector<32x128xf32>, vector<8x128xf32> -> vector<8x128xf32>
    %cst_10 = arith.constant dense<0.000000e+00> : vector<8x128xf32>
    %9 = tpu.matmul %3, %6, %cst_10 {dimension_numbers = #tpu.dot_dimension_numbers<[1], [0], [0], [1], [0, 0, 1, 1], [], []>, precision = #tpu.contract_precision<fp32>} : vector<8x32xf32>, vector<32x128xf32>, vector<8x128xf32> -> vector<8x128xf32>
    %cst_11 = arith.constant dense<0.000000e+00> : vector<8x8xf32>
    %10 = tpu.matmul %7, %8, %cst_11 {dimension_numbers = #tpu.dot_dimension_numbers<[1], [1], [0], [0], [0, 0, 1, 0], [], []>, precision = #tpu.contract_precision<fp32>} : vector<8x128xf32>, vector<8x128xf32>, vector<8x8xf32> -> vector<8x8xf32>
    %11 = tpu.iota {dimensions = array<i32: 0>} : vector<8x8xi32>
    %c8_i32 = arith.constant 8 : i32
    %12 = arith.muli %arg1, %c8_i32 : i32
    %13 = vector.broadcast %12 : i32 to vector<8x8xi32>
    %14 = arith.addi %11, %13 : vector<8x8xi32>
    %15 = tpu.iota {dimensions = array<i32: 1>} : vector<8x8xi32>
    %16 = arith.cmpi sle, %15, %14 : vector<8x8xi32>
    %cst_12 = arith.constant -1.000000e+30 : f32
    %17 = vector.broadcast %cst_12 : f32 to vector<8x8xf32>
    %18 = arith.select %16, %10, %17 : vector<8x8xi1>, vector<8x8xf32>
    %cst_13 = arith.constant dense<0xFF800000> : vector<8xf32>
    %19 = vector.multi_reduction <maximumf>, %18, %cst_13 [1] : vector<8x8xf32> to vector<8xf32>
    %20 = vector.shape_cast %19 : vector<8xf32> to vector<8x1xf32>
    %21 = vector.broadcast %20 : vector<8x1xf32> to vector<8x8xf32>
    %22 = arith.subf %18, %21 : vector<8x8xf32>
    %23 = math.exp %22 : vector<8x8xf32>
    %cst_14 = arith.constant dense<0.000000e+00> : vector<8xf32>
    %24 = vector.multi_reduction <add>, %23, %cst_14 [1] : vector<8x8xf32> to vector<8xf32>
    %25 = vector.shape_cast %24 : vector<8xf32> to vector<8x1xf32>
    %26 = vector.broadcast %25 : vector<8x1xf32> to vector<8x8xf32>
    %27 = arith.divf %23, %26 : vector<8x8xf32>
    %cst_15 = arith.constant dense<0.000000e+00> : vector<8x128xf32>
    %28 = tpu.matmul %27, %9, %cst_15 {dimension_numbers = #tpu.dot_dimension_numbers<[1], [0], [0], [1], [0, 0, 1, 1], [], []>, precision = #tpu.contract_precision<fp32>} : vector<8x8xf32>, vector<8x128xf32>, vector<8x128xf32> -> vector<8x128xf32>
    %c0_16 = arith.constant 0 : index
    %c0_17 = arith.constant 0 : index
    %c0_18 = arith.constant 0 : index
    %29 = vector.load %arg5[%c0_16, %c0_17, %c0_18] : memref<1x8x128xf32, #tpu.memory_space<vmem>>, vector<1x8x128xf32>
    %30 = vector.shape_cast %29 : vector<1x8x128xf32> to vector<8x128xf32>
    %31 = vector.shape_cast %28 : vector<8x128xf32> to vector<1x8x128xf32>
    tpu.vector_store %arg5[%c0_16, %c0_17, %c0_18], %31 {strides = array<i32>} : memref<1x8x128xf32, #tpu.memory_space<vmem>>, vector<1x8x128xf32>,
    return
  }
  func.func @transform_0(%arg0: i32, %arg1: i32) -> (i32, i32, i32) {
    %c0_i32 = arith.constant 0 : i32
    %c0_i32_0 = arith.constant 0 : i32
    return %arg0, %arg1, %c0_i32 : i32, i32, i32
  }
  func.func @transform_1(%arg0: i32, %arg1: i32) -> (i32, i32, i32) {
    %c0_i32 = arith.constant 0 : i32
    %c0_i32_0 = arith.constant 0 : i32
    %c0_i32_1 = arith.constant 0 : i32
    return %arg0, %c0_i32, %c0_i32_0 : i32, i32, i32
  }
  func.func @transform_2(%arg0: i32, %arg1: i32) -> (i32, i32) {
    %c0_i32 = arith.constant 0 : i32
    %c0_i32_0 = arith.constant 0 : i32
    %c0_i32_1 = arith.constant 0 : i32
    return %c0_i32, %c0_i32_0 : i32, i32
  }
  func.func @transform_3(%arg0: i32, %arg1: i32) -> (i32, i32, i32) {
    %c0_i32 = arith.constant 0 : i32
    %c0_i32_0 = arith.constant 0 : i32
    return %arg0, %arg1, %c0_i32 : i32, i32, i32
  }
}

</mosaic_0001>

<llo_original>
// kernel: tpu_custom_call.1
$region0: #{tpu_custom_call.1}
  #allocation0 [shape = 'u32[]', space=smem, size = 0x4, offset = 0x4, fixed_abs, tag = 'smem constant byte address 0x4 - core index']
  #allocation1 [shape = 'u32[72,128]{1,0:T(1,128)}', space=vmem, size = 0x9000, scoped, tag = 'internal scratch']
  %s0 = inlined_call_operand.hbm [shape: f32[2,8,32], index: 0, kind: input, shape index: {}]
  %s1 = inlined_call_operand.hbm [shape: f32[2,8,32], index: 1, kind: input, shape index: {}]
  %s2 = inlined_call_operand.hbm [shape: f32[32,384], index: 2, kind: input, shape index: {}]
  %s3 = inlined_call_operand.hbm [shape: f32[2,8,128], index: 3, kind: output, shape index: {}]
  %s4 = sld [smem:[#allocation0]]
  $region57: #{tpu_custom_call.1} parent=0
    _
  %s6 = ssub.s32 1, %s4
  %s7 = scalar_select 0, %s6, %s4
  $region1: #{tpu_custom_call.1} parent=0
    #allocation2 [shape = 'u8[8192]{0}', space=vmem, size = 0x2000, scoped, tag = 'input window, operand 0']
    #allocation3 [shape = 's32[2]{0}', space=sflag, size = 0x8, scoped, tag = 'scoped memory for tpu_custom_call.1']
    #allocation4 [shape = 's32[2]{0}', space=sflag, size = 0x8, scoped, tag = 'scoped memory for tpu_custom_call.1']
    #allocation5 [shape = 'u8[8192]{0}', space=vmem, size = 0x2000, scoped, tag = 'input window, operand 1']
    #allocation6 [shape = 's32[2]{0}', space=sflag, size = 0x8, scoped, tag = 'scoped memory for tpu_custom_call.1']
    #allocation7 [shape = 'u8[49152]{0}', space=vmem, size = 0xc000, scoped, tag = 'input window, operand 2, single buffered']
    #allocation8 [shape = 'u8[8192]{0}', space=vmem, size = 0x2000, scoped, tag = 'output window, operand 0']
    %8 = vsyncpa [#allocation3], 0
    %s9 = scalar_lea.sflag [#allocation3], 1
    %10 = vsyncpa %s9, 0
    %11 = vsyncpa [#allocation6], 0
    %s12 = scalar_lea.sflag [#allocation6], 1
    %13 = vsyncpa %s12, 0
    %14 = vsyncpa [#allocation4], 0
    %s15 = scalar_lea.sflag [#allocation4], 1
    %16 = vsyncpa %s15, 0
    loop: start=0, step=1, limit=4
    $region2: #{tpu_custom_call.1} parent=1 // loop_pre_header
      _
    $region3: #{tpu_custom_call.1} parent=1 // loop_header
      %s18 = sphi 0, %s22
      %p19 = scmp.ge.s32.totalorder %s18, 4
      %s25 = sphi 0, %s37
      %s26 = sphi 0, %s33
      %s27 = sphi 0, %s25
      %s28 = sphi 0, %s26
      %s29 = sphi 0, %s27
      %s30 = sphi 0, %s28
      %s42 = sphi 0, %s44
      %s45 = sphi 0, %s42
      %s46 = sphi 0, %s45
      %s62 = sphi 0, %s46
      %s68 = sphi 0, %s70
      %s71 = sphi 0, %s68
      %s72 = sphi 0, %s71
      %s88 = sphi 0, %s72
      %s92 = sphi 0, %s92
      %s94 = sphi 0, %s92
      %s95 = sphi 0, %s94
      %s109 = sphi 0, %s95
      %s117 = sphi 0, %s119
      %s120 = sphi 0, %s117
      %s121 = sphi 0, %s120
      %s137 = sphi 0, %s121
    $region4: #{tpu_custom_call.1} parent=1 // loop_header_branch
      %21 = sbr.rel (%p19) target = $region8
    $region5: #{tpu_custom_call.1} parent=1 // loop_body
      %s23 = ssub.s32 %s18, 1
      %s24 = ssub.s32 %s18, 2
      %s31 = sadd.s32 1, %s26
      %p32 = scmp.ge.s32.totalorder %s31, 1
      %s33 = scalar_select %p32, 0, %s31
      %s34 = sadd.s32 1, %s25
      %s35 = scalar_select %p32, %s34, %s25
      %p36 = scmp.ge.s32.totalorder %s35, 2
      %s37 = scalar_select %p36, 0, %s35
      %s38 = ssub.s32 %s25, %s37
      %s39 = ssub.s32 %s26, %s33
      %s40 = sor.u32 %s38, %s39
      %p41 = scmp.eq.s32.totalorder %s40, 0
      %s43 = sadd.s32 %s42, 1
      %s44 = scalar_select %p41, %s42, %s43
      %p47 = pneg %p41
      %p48 = scmp.eq.s32.totalorder %s18, 1
      %p49 = por %p47, %p48
      %p50 = scmp.ne.s32.totalorder %s42, %s45
      %p51 = scmp.eq.s32.totalorder %s18, 0
      %p52 = por %p50, %p51
      %p53 = scmp.ne.s32.totalorder %s42, %s45
      %p54 = scmp.eq.s32.totalorder %s23, 1
      %p55 = por %p53, %p54
      %p56 = scmp.ne.s32.totalorder %s45, %s46
      %p57 = scmp.eq.s32.totalorder %s23, 0
      %p58 = por %p56, %p57
      %p59 = scmp.ne.s32.totalorder %s45, %s46
      %p60 = scmp.eq.s32.totalorder %s24, 1
      %p61 = por %p59, %p60
      %p63 = scmp.ne.s32.totalorder %s46, %s62
      %p64 = scmp.eq.s32.totalorder %s24, 0
      %p65 = por %p63, %p64
      %s66 = ssub.s32 %s25, %s37
      %p67 = scmp.eq.s32.totalorder %s66, 0
      %s69 = sadd.s32 %s68, 1
      %s70 = scalar_select %p67, %s68, %s69
      %p73 = pneg %p67
      %p74 = scmp.eq.s32.totalorder %s18, 1
      %p75 = por %p73, %p74
      %p76 = scmp.ne.s32.totalorder %s68, %s71
      %p77 = scmp.eq.s32.totalorder %s18, 0
      %p78 = por %p76, %p77
      %p79 = scmp.ne.s32.totalorder %s68, %s71
      %p80 = scmp.eq.s32.totalorder %s23, 1
      %p81 = por %p79, %p80
      %p82 = scmp.ne.s32.totalorder %s71, %s72
      %p83 = scmp.eq.s32.totalorder %s23, 0
      %p84 = por %p82, %p83
      %p85 = scmp.ne.s32.totalorder %s71, %s72
      %p86 = scmp.eq.s32.totalorder %s24, 1
      %p87 = por %p85, %p86
      %p89 = scmp.ne.s32.totalorder %s72, %s88
      %p90 = scmp.eq.s32.totalorder %s24, 0
      %p91 = por %p89, %p90
      %s93 = sadd.s32 %s92, 1
      %p96 = scmp.eq.s32.totalorder %s18, 1
      %p97 = scmp.ne.s32.totalorder %s92, %s94
      %p98 = scmp.eq.s32.totalorder %s18, 0
      %p99 = por %p97, %p98
      %p100 = scmp.ne.s32.totalorder %s92, %s94
      %p101 = scmp.eq.s32.totalorder %s23, 1
      %p102 = por %p100, %p101
      %p103 = scmp.ne.s32.totalorder %s94, %s95
      %p104 = scmp.eq.s32.totalorder %s23, 0
      %p105 = por %p103, %p104
      %p106 = scmp.ne.s32.totalorder %s94, %s95
      %p107 = scmp.eq.s32.totalorder %s24, 1
      %p108 = por %p106, %p107
      %p110 = scmp.ne.s32.totalorder %s95, %s109
      %p111 = scmp.eq.s32.totalorder %s24, 0
      %p112 = por %p110, %p111
      %s113 = ssub.s32 %s25, %s37
      %s114 = ssub.s32 %s26, %s33
      %s115 = sor.u32 %s113, %s114
      %p116 = scmp.eq.s32.totalorder %s115, 0
      %s118 = sadd.s32 %s117, 1
      %s119 = scalar_select %p116, %s117, %s118
      %p122 = pneg %p116
      %p123 = scmp.eq.s32.totalorder %s18, 1
      %p124 = por %p122, %p123
      %p125 = scmp.ne.s32.totalorder %s117, %s120
      %p126 = scmp.eq.s32.totalorder %s18, 0
      %p127 = por %p125, %p126
      %p128 = scmp.ne.s32.totalorder %s117, %s120
      %p129 = scmp.eq.s32.totalorder %s23, 1
      %p130 = por %p128, %p129
      %p131 = scmp.ne.s32.totalorder %s120, %s121
      %p132 = scmp.eq.s32.totalorder %s23, 0
      %p133 = por %p131, %p132
      %p134 = scmp.ne.s32.totalorder %s120, %s121
      %p135 = scmp.eq.s32.totalorder %s24, 1
      %p136 = por %p134, %p135
      %p138 = scmp.ne.s32.totalorder %s121, %s137
      %p139 = scmp.eq.s32.totalorder %s24, 0
      %p140 = por %p138, %p139
      %p141 = scmp.le.s32.totalorder 1, %s18
      %p142 = scmp.lt.s32.totalorder %s18, 3
      %p143 = pnand %p141, %p142
      %p144 = pneg %p143
      // Predicated region
      $region9: #{tpu_custom_call.1} parent=5 // pred_check
        _
      $region10: #{tpu_custom_call.1} parent=5 // pred_check_branch
        %146 = sbr.rel (%p143) target = $region12
      $region11: #{tpu_custom_call.1} parent=5 // pred_region
        %s147 = ssub.s32 %s18, 1
        // Predicated region
        $region13: #{tpu_custom_call.1} parent=11 // pred_check
          %p148 = pneg %p105
        $region14: #{tpu_custom_call.1} parent=11 // pred_check_branch
          %150 = sbr.rel (%p148) target = $region16
        $region15: #{tpu_custom_call.1} parent=11 // pred_region
          %152 = vsyncadd [#allocation6], 0
          %s153 = sshll.u32 %s2, 4
          %s154 = int_to_ptr.hbm [resolvable:$true] %s153
          %s155 = sshll.u32 [#allocation7], 4
          %s156 = int_to_ptr.vmem [resolvable:$true] %s155
          %161 = dma.hbm_to_vmem [thread:$0]  %s154, 1536, %s156, [#allocation6], 384, 384, 24
        $region16: #{tpu_custom_call.1} parent=11 // pred_fallthru
          _
      $region12: #{tpu_custom_call.1} parent=5 // pred_fallthru
        _
      %p162 = scmp.lt.s32.totalorder %s18, 2
      // Predicated region
      $region17: #{tpu_custom_call.1} parent=5 // pred_check
        %p163 = pneg %p162
      $region18: #{tpu_custom_call.1} parent=5 // pred_check_branch
        %165 = sbr.rel (%p163) target = $region20
      $region19: #{tpu_custom_call.1} parent=5 // pred_region
        // Predicated region
        $region21: #{tpu_custom_call.1} parent=19 // pred_check
          %p166 = pneg %p52
        $region22: #{tpu_custom_call.1} parent=19 // pred_check_branch
          %168 = sbr.rel (%p166) target = $region24
        $region23: #{tpu_custom_call.1} parent=19 // pred_region
          %s169 = sand.u32 %s42, 1
          %s170 = scalar_lea.sflag [#allocation3], %s169
          %s171 = sand.u32 %s42, 1
          %s172 = smul.addr %s171, 8
          %s173 = scalar_lea.vmem [#allocation2], %s172
          %175 = vsyncadd %s170, 0
          %s176 = sadd.s32 %s26, %s25
          %s177 = smul.addr %s176, 8
          %s178 = scalar_lea.hbm %s0, %s177
          %s180 = sshll.u32 %s178, 4
          %s181 = int_to_ptr.hbm [resolvable:$true] %s180
          %s182 = sshll.u32 %s173, 4
          %s183 = int_to_ptr.vmem [resolvable:$true] %s182
          %185 = dma.hbm_to_vmem [thread:$0]  %s181, 128, %s183, %s170
        $region24: #{tpu_custom_call.1} parent=19 // pred_fallthru
          _
        // Predicated region
        $region25: #{tpu_custom_call.1} parent=19 // pred_check
          %p186 = pneg %p78
        $region26: #{tpu_custom_call.1} parent=19 // pred_check_branch
          %188 = sbr.rel (%p186) target = $region28
        $region27: #{tpu_custom_call.1} parent=19 // pred_region
          %s189 = sand.u32 %s18, 1
          %s190 = scalar_lea.sflag [#allocation6], %s189
          %s191 = sand.u32 %s68, 1
          %s192 = smul.addr %s191, 8
          %s193 = scalar_lea.vmem [#allocation5], %s192
          %195 = vsyncadd %s190, 0
          %s196 = smul.addr %s25, 8
          %s197 = scalar_lea.hbm %s1, %s196
          %s199 = sshll.u32 %s197, 4
          %s200 = int_to_ptr.hbm [resolvable:$true] %s199
          %s201 = sshll.u32 %s193, 4
          %s202 = int_to_ptr.vmem [resolvable:$true] %s201
          %204 = dma.hbm_to_vmem [thread:$0]  %s200, 128, %s202, %s190
        $region28: #{tpu_custom_call.1} parent=19 // pred_fallthru
          _
      $region20: #{tpu_custom_call.1} parent=5 // pred_fallthru
        _
      %p205 = scmp.le.s32.totalorder 1, %s18
      %p206 = scmp.lt.s32.totalorder %s18, 3
      %p207 = pnand %p205, %p206
      %p208 = pneg %p207
      // Predicated region
      $region29: #{tpu_custom_call.1} parent=5 // pred_check
        _
      $region30: #{tpu_custom_call.1} parent=5 // pred_check_branch
        %210 = sbr.rel (%p207) target = $region32
      $region31: #{tpu_custom_call.1} parent=5 // pred_region
        %s211 = ssub.s32 %s18, 1
        %s212 = sand.u32 %s45, 1
        %s213 = scalar_lea.sflag [#allocation3], %s212
        %s214 = sand.u32 %s45, 1
        %s215 = smul.addr %s214, 8
        %s216 = scalar_lea.vmem [#allocation2], %s215
        // Predicated region
        $region33: #{tpu_custom_call.1} parent=31 // pred_check
          %p217 = pneg %p58
        $region34: #{tpu_custom_call.1} parent=31 // pred_check_branch
          %219 = sbr.rel (%p217) target = $region36
        $region35: #{tpu_custom_call.1} parent=31 // pred_region
          %221 = dma.done %s213, 128
        $region36: #{tpu_custom_call.1} parent=31 // pred_fallthru
          _
        %s222 = sand.u32 %s23, 1
        %s223 = scalar_lea.sflag [#allocation6], %s222
        %s224 = sand.u32 %s71, 1
        %s225 = smul.addr %s224, 8
        %s226 = scalar_lea.vmem [#allocation5], %s225
        // Predicated region
        $region37: #{tpu_custom_call.1} parent=31 // pred_check
          %p227 = pneg %p84
        $region38: #{tpu_custom_call.1} parent=31 // pred_check_branch
          %229 = sbr.rel (%p227) target = $region40
        $region39: #{tpu_custom_call.1} parent=31 // pred_region
          %231 = dma.done %s223, 128
        $region40: #{tpu_custom_call.1} parent=31 // pred_fallthru
          _
        // Predicated region
        $region41: #{tpu_custom_call.1} parent=31 // pred_check
          %p232 = pneg %p105
        $region42: #{tpu_custom_call.1} parent=31 // pred_check_branch
          %234 = sbr.rel (%p232) target = $region44
        $region43: #{tpu_custom_call.1} parent=31 // pred_region
          %236 = dma.done [#allocation6], 1536
        $region44: #{tpu_custom_call.1} parent=31 // pred_fallthru
          _
        %s237 = sand.u32 %s45, 1
        %s238 = scalar_lea.sflag [#allocation3], %s237
        %s239 = sand.u32 %s45, 1
        %s240 = smul.addr %s239, 8
        %s241 = scalar_lea.vmem [#allocation2], %s240
        %p242 = pneg %p58
        %p243 = pneg %p55
        %s244 = sand.u32 %s23, 1
        %s245 = scalar_lea.sflag [#allocation6], %s244
        %s246 = sand.u32 %s71, 1
        %s247 = smul.addr %s246, 8
        %s248 = scalar_lea.vmem [#allocation5], %s247
        %p249 = pneg %p84
        %p250 = pneg %p81
        %p251 = pneg %p105
        %p252 = pneg %p102
        %p253 = pneg %p133
        %p254 = pneg %p130
        %s255 = sand.u32 %s120, 1
        %s256 = scalar_lea.sflag [#allocation4], %s255
        %s257 = sand.u32 %s120, 1
        %s258 = smul.addr %s257, 8
        %s259 = scalar_lea.vmem [#allocation8], %s258
        %v260 = vld [vmem:[%s216] sm:$0xff]
        %v261 = vld [vmem:[%s226] sm:$0xff]
        %v262 = vld [vmem:[#allocation7] sm:$0xff]
        %v263 = vld [vmem:[#allocation7 + $0x18] sm:$0xff]
        %v264 = vld [vmem:[#allocation7 + $0x30] sm:$0xff]
        %v265 = vld [vmem:[#allocation7 + $0x48] sm:$0xff]
        %v266 = vld [vmem:[#allocation7 + $0x8] sm:$0xff]
        %v267 = vld [vmem:[#allocation7 + $0x20] sm:$0xff]
        %v268 = vld [vmem:[#allocation7 + $0x38] sm:$0xff]
        %v269 = vld [vmem:[#allocation7 + $0x50] sm:$0xff]
        %v270 = vld [vmem:[#allocation7 + $0x10] sm:$0xff]
        %v271 = vld [vmem:[#allocation7 + $0x28] sm:$0xff]
        %v272 = vld [vmem:[#allocation7 + $0x40] sm:$0xff]
        %v273 = vld [vmem:[#allocation7 + $0x58] sm:$0xff]
        %vm274 = vcmask 261120
        %v276 = vsel %vm274, %v260, 0
        %278 = vmatpush.msra.mxu0 0.0
        %279 = vmatpush.msra.mxu0 0.0
        %280 = vmatpush.msra.mxu0 0.0
        %281 = vmatpush.msra.mxu0 0.0
        %282 = vmatpush.msra.mxu0 0.0
        %283 = vmatpush.msra.mxu0 0.0
        %284 = vmatpush.msra.mxu0 0.0
        %285 = vmatpush.msra.mxu0 0.0
        %286 = vmatpush.msra.mxu0 0.0
        %287 = vmatpush.msra.mxu0 0.0
        %288 = vmatpush.msra.mxu0 0.0
        %289 = vmatpush.msra.mxu0 0.0
        %v290 = vand.u32 %v265, 4294901760
        %291 = vmatpush.msra.mxu0 %v290
        %v292 = vand.u32 %v264, 4294901760
        %293 = vmatpush.msra.mxu0 %v292
        %v294 = vand.u32 %v263, 4294901760
        %295 = vmatpush.msra.mxu0 %v294
        %v296 = vand.u32 %v262, 4294901760
        %297 = vmatpush.msra.mxu0 %v296
        %v298 = vand.u32 %v276, 4294901760
        %v299 = vsub.f32 %v276, %v298
        %v300 = vand.u32 %v299, 4294901760
        %v301 = vsub.f32 %v299, %v300
        %v302 = vand.u32 %v301, 4294901760
        %303 = vmatmul.f32.gmra.mxu0 %v302
        %v304 = vpop.f32.mrf.mxu0
        %v305 = vadd.f32 0.0, %v304
        %306 = vdwg.mxu0
        %307 = vmatpush.msra.mxu0 0.0
        %308 = vmatpush.msra.mxu0 0.0
        %309 = vmatpush.msra.mxu0 0.0
        %310 = vmatpush.msra.mxu0 0.0
        %311 = vmatpush.msra.mxu0 0.0
        %312 = vmatpush.msra.mxu0 0.0
        %313 = vmatpush.msra.mxu0 0.0
        %314 = vmatpush.msra.mxu0 0.0
        %315 = vmatpush.msra.mxu0 0.0
        %316 = vmatpush.msra.mxu0 0.0
        %317 = vmatpush.msra.mxu0 0.0
        %318 = vmatpush.msra.mxu0 0.0
        %v319 = vand.u32 %v265, 4294901760
        %v320 = vsub.f32 %v265, %v319
        %v321 = vand.u32 %v320, 4294901760
        %v322 = vsub.f32 %v320, %v321
        %v323 = vand.u32 %v322, 4294901760
        %324 = vmatpush.msra.mxu0 %v323
        %v325 = vand.u32 %v264, 4294901760
        %v326 = vsub.f32 %v264, %v325
        %v327 = vand.u32 %v326, 4294901760
        %v328 = vsub.f32 %v326, %v327
        %v329 = vand.u32 %v328, 4294901760
        %330 = vmatpush.msra.mxu0 %v329
        %v331 = vand.u32 %v263, 4294901760
        %v332 = vsub.f32 %v263, %v331
        %v333 = vand.u32 %v332, 4294901760
        %v334 = vsub.f32 %v332, %v333
        %v335 = vand.u32 %v334, 4294901760
        %336 = vmatpush.msra.mxu0 %v335
        %v337 = vand.u32 %v262, 4294901760
        %v338 = vsub.f32 %v262, %v337
        %v339 = vand.u32 %v338, 4294901760
        %v340 = vsub.f32 %v338, %v339
        %v341 = vand.u32 %v340, 4294901760
        %342 = vmatpush.msra.mxu0 %v341
        %v343 = vand.u32 %v276, 4294901760
        %344 = vmatmul.f32.gmra.mxu0 %v343
        %v345 = vpop.f32.mrf.mxu0
        %v346 = vadd.f32 %v305, %v345
        %347 = vdwg.mxu0
        %348 = vmatpush.msra.mxu0 0.0
        %349 = vmatpush.msra.mxu0 0.0
        %350 = vmatpush.msra.mxu0 0.0
        %351 = vmatpush.msra.mxu0 0.0
        %352 = vmatpush.msra.mxu0 0.0
        %353 = vmatpush.msra.mxu0 0.0
        %354 = vmatpush.msra.mxu0 0.0
        %355 = vmatpush.msra.mxu0 0.0
        %356 = vmatpush.msra.mxu0 0.0
        %357 = vmatpush.msra.mxu0 0.0
        %358 = vmatpush.msra.mxu0 0.0
        %359 = vmatpush.msra.mxu0 0.0
        %v360 = vand.u32 %v265, 4294901760
        %v361 = vsub.f32 %v265, %v360
        %362 = vmatpush.msra.mxu0 %v361
        %v363 = vand.u32 %v264, 4294901760
        %v364 = vsub.f32 %v264, %v363
        %365 = vmatpush.msra.mxu0 %v364
        %v366 = vand.u32 %v263, 4294901760
        %v367 = vsub.f32 %v263, %v366
        %368 = vmatpush.msra.mxu0 %v367
        %v369 = vand.u32 %v262, 4294901760
        %v370 = vsub.f32 %v262, %v369
        %371 = vmatpush.msra.mxu0 %v370
        %v372 = vand.u32 %v276, 4294901760
        %v373 = vsub.f32 %v276, %v372
        %374 = vmatmul.f32.gmra.mxu0 %v373
        %v375 = vpop.f32.mrf.mxu0
        %v376 = vadd.f32 %v346, %v375
        %377 = vdwg.mxu0
        %378 = vmatpush.msra.mxu0 0.0
        %379 = vmatpush.msra.mxu0 0.0
        %380 = vmatpush.msra.mxu0 0.0
        %381 = vmatpush.msra.mxu0 0.0
        %382 = vmatpush.msra.mxu0 0.0
        %383 = vmatpush.msra.mxu0 0.0
        %384 = vmatpush.msra.mxu0 0.0
        %385 = vmatpush.msra.mxu0 0.0
        %386 = vmatpush.msra.mxu0 0.0
        %387 = vmatpush.msra.mxu0 0.0
        %388 = vmatpush.msra.mxu0 0.0
        %389 = vmatpush.msra.mxu0 0.0
        %v390 = vand.u32 %v265, 4294901760
        %391 = vmatpush.msra.mxu0 %v390
        %v392 = vand.u32 %v264, 4294901760
        %393 = vmatpush.msra.mxu0 %v392
        %v394 = vand.u32 %v263, 4294901760
        %395 = vmatpush.msra.mxu0 %v394
        %v396 = vand.u32 %v262, 4294901760
        %397 = vmatpush.msra.mxu0 %v396
        %v398 = vand.u32 %v276, 4294901760
        %v399 = vsub.f32 %v276, %v398
        %v400 = vand.u32 %v399, 4294901760
        %401 = vmatmul.f32.gmra.mxu0 %v400
        %v402 = vpop.f32.mrf.mxu0
        %v403 = vadd.f32 %v376, %v402
        %404 = vdwg.mxu0
        %405 = vmatpush.msra.mxu0 0.0
        %406 = vmatpush.msra.mxu0 0.0
        %407 = vmatpush.msra.mxu0 0.0
        %408 = vmatpush.msra.mxu0 0.0
        %409 = vmatpush.msra.mxu0 0.0
        %410 = vmatpush.msra.mxu0 0.0
        %411 = vmatpush.msra.mxu0 0.0
        %412 = vmatpush.msra.mxu0 0.0
        %413 = vmatpush.msra.mxu0 0.0
        %414 = vmatpush.msra.mxu0 0.0
        %415 = vmatpush.msra.mxu0 0.0
        %416 = vmatpush.msra.mxu0 0.0
        %v417 = vand.u32 %v265, 4294901760
        %v418 = vsub.f32 %v265, %v417
        %v419 = vand.u32 %v418, 4294901760
        %420 = vmatpush.msra.mxu0 %v419
        %v421 = vand.u32 %v264, 4294901760
        %v422 = vsub.f32 %v264, %v421
        %v423 = vand.u32 %v422, 4294901760
        %424 = vmatpush.msra.mxu0 %v423
        %v425 = vand.u32 %v263, 4294901760
        %v426 = vsub.f32 %v263, %v425
        %v427 = vand.u32 %v426, 4294901760
        %428 = vmatpush.msra.mxu0 %v427
        %v429 = vand.u32 %v262, 4294901760
        %v430 = vsub.f32 %v262, %v429
        %v431 = vand.u32 %v430, 4294901760
        %432 = vmatpush.msra.mxu0 %v431
        %v433 = vand.u32 %v276, 4294901760
        %434 = vmatmul.f32.gmra.mxu0 %v433
        %v435 = vpop.f32.mrf.mxu0
        %v436 = vadd.f32 %v403, %v435
        %437 = vdwg.mxu0
        %438 = vmatpush.msra.mxu0 0.0
        %439 = vmatpush.msra.mxu0 0.0
        %440 = vmatpush.msra.mxu0 0.0
        %441 = vmatpush.msra.mxu0 0.0
        %442 = vmatpush.msra.mxu0 0.0
        %443 = vmatpush.msra.mxu0 0.0
        %444 = vmatpush.msra.mxu0 0.0
        %445 = vmatpush.msra.mxu0 0.0
        %446 = vmatpush.msra.mxu0 0.0
        %447 = vmatpush.msra.mxu0 0.0
        %448 = vmatpush.msra.mxu0 0.0
        %449 = vmatpush.msra.mxu0 0.0
        %v450 = vand.u32 %v265, 4294901760
        %451 = vmatpush.msra.mxu0 %v450
        %v452 = vand.u32 %v264, 4294901760
        %453 = vmatpush.msra.mxu0 %v452
        %v454 = vand.u32 %v263, 4294901760
        %455 = vmatpush.msra.mxu0 %v454
        %v456 = vand.u32 %v262, 4294901760
        %457 = vmatpush.msra.mxu0 %v456
        %v458 = vand.u32 %v276, 4294901760
        %459 = vmatmul.f32.gmra.mxu0 %v458
        %v460 = vpop.f32.mrf.mxu0
        %v461 = vadd.f32 %v436, %v460
        %462 = vdwg.mxu0
        %v464 = vsel %vm274, %v261, 0
        %466 = vmatpush.msra.mxu0 0.0
        %467 = vmatpush.msra.mxu0 0.0
        %468 = vmatpush.msra.mxu0 0.0
        %469 = vmatpush.msra.mxu0 0.0
        %470 = vmatpush.msra.mxu0 0.0
        %471 = vmatpush.msra.mxu0 0.0
        %472 = vmatpush.msra.mxu0 0.0
        %473 = vmatpush.msra.mxu0 0.0
        %474 = vmatpush.msra.mxu0 0.0
        %475 = vmatpush.msra.mxu0 0.0
        %476 = vmatpush.msra.mxu0 0.0
        %477 = vmatpush.msra.mxu0 0.0
        %v478 = vand.u32 %v269, 4294901760
        %479 = vmatpush.msra.mxu0 %v478
        %v480 = vand.u32 %v268, 4294901760
        %481 = vmatpush.msra.mxu0 %v480
        %v482 = vand.u32 %v267, 4294901760
        %483 = vmatpush.msra.mxu0 %v482
        %v484 = vand.u32 %v266, 4294901760
        %485 = vmatpush.msra.mxu0 %v484
        %v486 = vand.u32 %v464, 4294901760
        %v487 = vsub.f32 %v464, %v486
        %v488 = vand.u32 %v487, 4294901760
        %v489 = vsub.f32 %v487, %v488
        %v490 = vand.u32 %v489, 4294901760
        %491 = vmatmul.f32.gmra.mxu0 %v490
        %v492 = vpop.f32.mrf.mxu0
        %v493 = vadd.f32 0.0, %v492
        %494 = vdwg.mxu0
        %495 = vmatpush.msra.mxu0 0.0
        %496 = vmatpush.msra.mxu0 0.0
        %497 = vmatpush.msra.mxu0 0.0
        %498 = vmatpush.msra.mxu0 0.0
        %499 = vmatpush.msra.mxu0 0.0
        %500 = vmatpush.msra.mxu0 0.0
        %501 = vmatpush.msra.mxu0 0.0
        %502 = vmatpush.msra.mxu0 0.0
        %503 = vmatpush.msra.mxu0 0.0
        %504 = vmatpush.msra.mxu0 0.0
        %505 = vmatpush.msra.mxu0 0.0
        %506 = vmatpush.msra.mxu0 0.0
        %v507 = vand.u32 %v269, 4294901760
        %v508 = vsub.f32 %v269, %v507
        %v509 = vand.u32 %v508, 4294901760
        %v510 = vsub.f32 %v508, %v509
        %v511 = vand.u32 %v510, 4294901760
        %512 = vmatpush.msra.mxu0 %v511
        %v513 = vand.u32 %v268, 4294901760
        %v514 = vsub.f32 %v268, %v513
        %v515 = vand.u32 %v514, 4294901760
        %v516 = vsub.f32 %v514, %v515
        %v517 = vand.u32 %v516, 4294901760
        %518 = vmatpush.msra.mxu0 %v517
        %v519 = vand.u32 %v267, 4294901760
        %v520 = vsub.f32 %v267, %v519
        %v521 = vand.u32 %v520, 4294901760
        %v522 = vsub.f32 %v520, %v521
        %v523 = vand.u32 %v522, 4294901760
        %524 = vmatpush.msra.mxu0 %v523
        %v525 = vand.u32 %v266, 4294901760
        %v526 = vsub.f32 %v266, %v525
        %v527 = vand.u32 %v526, 4294901760
        %v528 = vsub.f32 %v526, %v527
        %v529 = vand.u32 %v528, 4294901760
        %530 = vmatpush.msra.mxu0 %v529
        %v531 = vand.u32 %v464, 4294901760
        %532 = vmatmul.f32.gmra.mxu0 %v531
        %v533 = vpop.f32.mrf.mxu0
        %v534 = vadd.f32 %v493, %v533
        %535 = vdwg.mxu0
        %536 = vmatpush.msra.mxu0 0.0
        %537 = vmatpush.msra.mxu0 0.0
        %538 = vmatpush.msra.mxu0 0.0
        %539 = vmatpush.msra.mxu0 0.0
        %540 = vmatpush.msra.mxu0 0.0
        %541 = vmatpush.msra.mxu0 0.0
        %542 = vmatpush.msra.mxu0 0.0
        %543 = vmatpush.msra.mxu0 0.0
        %544 = vmatpush.msra.mxu0 0.0
        %545 = vmatpush.msra.mxu0 0.0
        %546 = vmatpush.msra.mxu0 0.0
        %547 = vmatpush.msra.mxu0 0.0
        %v548 = vand.u32 %v269, 4294901760
        %v549 = vsub.f32 %v269, %v548
        %550 = vmatpush.msra.mxu0 %v549
        %v551 = vand.u32 %v268, 4294901760
        %v552 = vsub.f32 %v268, %v551
        %553 = vmatpush.msra.mxu0 %v552
        %v554 = vand.u32 %v267, 4294901760
        %v555 = vsub.f32 %v267, %v554
        %556 = vmatpush.msra.mxu0 %v555
        %v557 = vand.u32 %v266, 4294901760
        %v558 = vsub.f32 %v266, %v557
        %559 = vmatpush.msra.mxu0 %v558
        %v560 = vand.u32 %v464, 4294901760
        %v561 = vsub.f32 %v464, %v560
        %562 = vmatmul.f32.gmra.mxu0 %v561
        %v563 = vpop.f32.mrf.mxu0
        %v564 = vadd.f32 %v534, %v563
        %565 = vdwg.mxu0
        %566 = vmatpush.msra.mxu0 0.0
        %567 = vmatpush.msra.mxu0 0.0
        %568 = vmatpush.msra.mxu0 0.0
        %569 = vmatpush.msra.mxu0 0.0
        %570 = vmatpush.msra.mxu0 0.0
        %571 = vmatpush.msra.mxu0 0.0
        %572 = vmatpush.msra.mxu0 0.0
        %573 = vmatpush.msra.mxu0 0.0
        %574 = vmatpush.msra.mxu0 0.0
        %575 = vmatpush.msra.mxu0 0.0
        %576 = vmatpush.msra.mxu0 0.0
        %577 = vmatpush.msra.mxu0 0.0
        %v578 = vand.u32 %v269, 4294901760
        %579 = vmatpush.msra.mxu0 %v578
        %v580 = vand.u32 %v268, 4294901760
        %581 = vmatpush.msra.mxu0 %v580
        %v582 = vand.u32 %v267, 4294901760
        %583 = vmatpush.msra.mxu0 %v582
        %v584 = vand.u32 %v266, 4294901760
        %585 = vmatpush.msra.mxu0 %v584
        %v586 = vand.u32 %v464, 4294901760
        %v587 = vsub.f32 %v464, %v586
        %v588 = vand.u32 %v587, 4294901760
        %589 = vmatmul.f32.gmra.mxu0 %v588
        %v590 = vpop.f32.mrf.mxu0
        %v591 = vadd.f32 %v564, %v590
        %592 = vdwg.mxu0
        %593 = vmatpush.msra.mxu0 0.0
        %594 = vmatpush.msra.mxu0 0.0
        %595 = vmatpush.msra.mxu0 0.0
        %596 = vmatpush.msra.mxu0 0.0
        %597 = vmatpush.msra.mxu0 0.0
        %598 = vmatpush.msra.mxu0 0.0
        %599 = vmatpush.msra.mxu0 0.0
        %600 = vmatpush.msra.mxu0 0.0
        %601 = vmatpush.msra.mxu0 0.0
        %602 = vmatpush.msra.mxu0 0.0
        %603 = vmatpush.msra.mxu0 0.0
        %604 = vmatpush.msra.mxu0 0.0
        %v605 = vand.u32 %v269, 4294901760
        %v606 = vsub.f32 %v269, %v605
        %v607 = vand.u32 %v606, 4294901760
        %608 = vmatpush.msra.mxu0 %v607
        %v609 = vand.u32 %v268, 4294901760
        %v610 = vsub.f32 %v268, %v609
        %v611 = vand.u32 %v610, 4294901760
        %612 = vmatpush.msra.mxu0 %v611
        %v613 = vand.u32 %v267, 4294901760
        %v614 = vsub.f32 %v267, %v613
        %v615 = vand.u32 %v614, 4294901760
        %616 = vmatpush.msra.mxu0 %v615
        %v617 = vand.u32 %v266, 4294901760
        %v618 = vsub.f32 %v266, %v617
        %v619 = vand.u32 %v618, 4294901760
        %620 = vmatpush.msra.mxu0 %v619
        %v621 = vand.u32 %v464, 4294901760
        %622 = vmatmul.f32.gmra.mxu0 %v621
        %v623 = vpop.f32.mrf.mxu0
        %v624 = vadd.f32 %v591, %v623
        %625 = vdwg.mxu0
        %626 = vmatpush.msra.mxu0 0.0
        %627 = vmatpush.msra.mxu0 0.0
        %628 = vmatpush.msra.mxu0 0.0
        %629 = vmatpush.msra.mxu0 0.0
        %630 = vmatpush.msra.mxu0 0.0
        %631 = vmatpush.msra.mxu0 0.0
        %632 = vmatpush.msra.mxu0 0.0
        %633 = vmatpush.msra.mxu0 0.0
        %634 = vmatpush.msra.mxu0 0.0
        %635 = vmatpush.msra.mxu0 0.0
        %636 = vmatpush.msra.mxu0 0.0
        %637 = vmatpush.msra.mxu0 0.0
        %v638 = vand.u32 %v269, 4294901760
        %639 = vmatpush.msra.mxu0 %v638
        %v640 = vand.u32 %v268, 4294901760
        %641 = vmatpush.msra.mxu0 %v640
        %v642 = vand.u32 %v267, 4294901760
        %643 = vmatpush.msra.mxu0 %v642
        %v644 = vand.u32 %v266, 4294901760
        %645 = vmatpush.msra.mxu0 %v644
        %v646 = vand.u32 %v464, 4294901760
        %647 = vmatmul.f32.gmra.mxu0 %v646
        %v648 = vpop.f32.mrf.mxu0
        %v649 = vadd.f32 %v624, %v648
        %650 = vdwg.mxu0
        %651 = vmatpush.msra.mxu0 0.0
        %652 = vmatpush.msra.mxu0 0.0
        %653 = vmatpush.msra.mxu0 0.0
        %654 = vmatpush.msra.mxu0 0.0
        %655 = vmatpush.msra.mxu0 0.0
        %656 = vmatpush.msra.mxu0 0.0
        %657 = vmatpush.msra.mxu0 0.0
        %658 = vmatpush.msra.mxu0 0.0
        %659 = vmatpush.msra.mxu0 0.0
        %660 = vmatpush.msra.mxu0 0.0
        %661 = vmatpush.msra.mxu0 0.0
        %662 = vmatpush.msra.mxu0 0.0
        %v663 = vand.u32 %v273, 4294901760
        %664 = vmatpush.msra.mxu0 %v663
        %v665 = vand.u32 %v272, 4294901760
        %666 = vmatpush.msra.mxu0 %v665
        %v667 = vand.u32 %v271, 4294901760
        %668 = vmatpush.msra.mxu0 %v667
        %v669 = vand.u32 %v270, 4294901760
        %670 = vmatpush.msra.mxu0 %v669
        %v671 = vand.u32 %v464, 4294901760
        %v672 = vsub.f32 %v464, %v671
        %v673 = vand.u32 %v672, 4294901760
        %v674 = vsub.f32 %v672, %v673
        %v675 = vand.u32 %v674, 4294901760
        %676 = vmatmul.f32.gmra.mxu0 %v675
        %v677 = vpop.f32.mrf.mxu0
        %v678 = vadd.f32 0.0, %v677
        %679 = vdwg.mxu0
        %680 = vmatpush.msra.mxu0 0.0
        %681 = vmatpush.msra.mxu0 0.0
        %682 = vmatpush.msra.mxu0 0.0
        %683 = vmatpush.msra.mxu0 0.0
        %684 = vmatpush.msra.mxu0 0.0
        %685 = vmatpush.msra.mxu0 0.0
        %686 = vmatpush.msra.mxu0 0.0
        %687 = vmatpush.msra.mxu0 0.0
        %688 = vmatpush.msra.mxu0 0.0
        %689 = vmatpush.msra.mxu0 0.0
        %690 = vmatpush.msra.mxu0 0.0
        %691 = vmatpush.msra.mxu0 0.0
        %v692 = vand.u32 %v273, 4294901760
        %v693 = vsub.f32 %v273, %v692
        %v694 = vand.u32 %v693, 4294901760
        %v695 = vsub.f32 %v693, %v694
        %v696 = vand.u32 %v695, 4294901760
        %697 = vmatpush.msra.mxu0 %v696
        %v698 = vand.u32 %v272, 4294901760
        %v699 = vsub.f32 %v272, %v698
        %v700 = vand.u32 %v699, 4294901760
        %v701 = vsub.f32 %v699, %v700
        %v702 = vand.u32 %v701, 4294901760
        %703 = vmatpush.msra.mxu0 %v702
        %v704 = vand.u32 %v271, 4294901760
        %v705 = vsub.f32 %v271, %v704
        %v706 = vand.u32 %v705, 4294901760
        %v707 = vsub.f32 %v705, %v706
        %v708 = vand.u32 %v707, 4294901760
        %709 = vmatpush.msra.mxu0 %v708
        %v710 = vand.u32 %v270, 4294901760
        %v711 = vsub.f32 %v270, %v710
        %v712 = vand.u32 %v711, 4294901760
        %v713 = vsub.f32 %v711, %v712
        %v714 = vand.u32 %v713, 4294901760
        %715 = vmatpush.msra.mxu0 %v714
        %v716 = vand.u32 %v464, 4294901760
        %717 = vmatmul.f32.gmra.mxu0 %v716
        %v718 = vpop.f32.mrf.mxu0
        %v719 = vadd.f32 %v678, %v718
        %720 = vdwg.mxu0
        %721 = vmatpush.msra.mxu0 0.0
        %722 = vmatpush.msra.mxu0 0.0
        %723 = vmatpush.msra.mxu0 0.0
        %724 = vmatpush.msra.mxu0 0.0
        %725 = vmatpush.msra.mxu0 0.0
        %726 = vmatpush.msra.mxu0 0.0
        %727 = vmatpush.msra.mxu0 0.0
        %728 = vmatpush.msra.mxu0 0.0
        %729 = vmatpush.msra.mxu0 0.0
        %730 = vmatpush.msra.mxu0 0.0
        %731 = vmatpush.msra.mxu0 0.0
        %732 = vmatpush.msra.mxu0 0.0
        %v733 = vand.u32 %v273, 4294901760
        %v734 = vsub.f32 %v273, %v733
        %735 = vmatpush.msra.mxu0 %v734
        %v736 = vand.u32 %v272, 4294901760
        %v737 = vsub.f32 %v272, %v736
        %738 = vmatpush.msra.mxu0 %v737
        %v739 = vand.u32 %v271, 4294901760
        %v740 = vsub.f32 %v271, %v739
        %741 = vmatpush.msra.mxu0 %v740
        %v742 = vand.u32 %v270, 4294901760
        %v743 = vsub.f32 %v270, %v742
        %744 = vmatpush.msra.mxu0 %v743
        %v745 = vand.u32 %v464, 4294901760
        %v746 = vsub.f32 %v464, %v745
        %747 = vmatmul.f32.gmra.mxu0 %v746
        %v748 = vpop.f32.mrf.mxu0
        %v749 = vadd.f32 %v719, %v748
        %750 = vdwg.mxu0
        %751 = vmatpush.msra.mxu0 0.0
        %752 = vmatpush.msra.mxu0 0.0
        %753 = vmatpush.msra.mxu0 0.0
        %754 = vmatpush.msra.mxu0 0.0
        %755 = vmatpush.msra.mxu0 0.0
        %756 = vmatpush.msra.mxu0 0.0
        %757 = vmatpush.msra.mxu0 0.0
        %758 = vmatpush.msra.mxu0 0.0
        %759 = vmatpush.msra.mxu0 0.0
        %760 = vmatpush.msra.mxu0 0.0
        %761 = vmatpush.msra.mxu0 0.0
        %762 = vmatpush.msra.mxu0 0.0
        %v763 = vand.u32 %v273, 4294901760
        %764 = vmatpush.msra.mxu0 %v763
        %v765 = vand.u32 %v272, 4294901760
        %766 = vmatpush.msra.mxu0 %v765
        %v767 = vand.u32 %v271, 4294901760
        %768 = vmatpush.msra.mxu0 %v767
        %v769 = vand.u32 %v270, 4294901760
        %770 = vmatpush.msra.mxu0 %v769
        %v771 = vand.u32 %v464, 4294901760
        %v772 = vsub.f32 %v464, %v771
        %v773 = vand.u32 %v772, 4294901760
        %774 = vmatmul.f32.gmra.mxu0 %v773
        %v775 = vpop.f32.mrf.mxu0
        %v776 = vadd.f32 %v749, %v775
        %777 = vdwg.mxu0
        %778 = vmatpush.msra.mxu0 0.0
        %779 = vmatpush.msra.mxu0 0.0
        %780 = vmatpush.msra.mxu0 0.0
        %781 = vmatpush.msra.mxu0 0.0
        %782 = vmatpush.msra.mxu0 0.0
        %783 = vmatpush.msra.mxu0 0.0
        %784 = vmatpush.msra.mxu0 0.0
        %785 = vmatpush.msra.mxu0 0.0
        %786 = vmatpush.msra.mxu0 0.0
        %787 = vmatpush.msra.mxu0 0.0
        %788 = vmatpush.msra.mxu0 0.0
        %789 = vmatpush.msra.mxu0 0.0
        %v790 = vand.u32 %v273, 4294901760
        %v791 = vsub.f32 %v273, %v790
        %v792 = vand.u32 %v791, 4294901760
        %793 = vmatpush.msra.mxu0 %v792
        %v794 = vand.u32 %v272, 4294901760
        %v795 = vsub.f32 %v272, %v794
        %v796 = vand.u32 %v795, 4294901760
        %797 = vmatpush.msra.mxu0 %v796
        %v798 = vand.u32 %v271, 4294901760
        %v799 = vsub.f32 %v271, %v798
        %v800 = vand.u32 %v799, 4294901760
        %801 = vmatpush.msra.mxu0 %v800
        %v802 = vand.u32 %v270, 4294901760
        %v803 = vsub.f32 %v270, %v802
        %v804 = vand.u32 %v803, 4294901760
        %805 = vmatpush.msra.mxu0 %v804
        %v806 = vand.u32 %v464, 4294901760
        %807 = vmatmul.f32.gmra.mxu0 %v806
        %v808 = vpop.f32.mrf.mxu0
        %v809 = vadd.f32 %v776, %v808
        %810 = vdwg.mxu0
        %811 = vmatpush.msra.mxu0 0.0
        %812 = vmatpush.msra.mxu0 0.0
        %813 = vmatpush.msra.mxu0 0.0
        %814 = vmatpush.msra.mxu0 0.0
        %815 = vmatpush.msra.mxu0 0.0
        %816 = vmatpush.msra.mxu0 0.0
        %817 = vmatpush.msra.mxu0 0.0
        %818 = vmatpush.msra.mxu0 0.0
        %819 = vmatpush.msra.mxu0 0.0
        %820 = vmatpush.msra.mxu0 0.0
        %821 = vmatpush.msra.mxu0 0.0
        %822 = vmatpush.msra.mxu0 0.0
        %v823 = vand.u32 %v273, 4294901760
        %824 = vmatpush.msra.mxu0 %v823
        %v825 = vand.u32 %v272, 4294901760
        %826 = vmatpush.msra.mxu0 %v825
        %v827 = vand.u32 %v271, 4294901760
        %828 = vmatpush.msra.mxu0 %v827
        %v829 = vand.u32 %v270, 4294901760
        %830 = vmatpush.msra.mxu0 %v829
        %v831 = vand.u32 %v464, 4294901760
        %832 = vmatmul.f32.gmra.mxu0 %v831
        %v833 = vpop.f32.mrf.mxu0
        %v834 = vadd.f32 %v809, %v833
        %835 = vdwg.mxu0
        %836 = vmatpush.xpose.msra.mxu0 0.0
        %837 = vmatpush.xpose.msra.mxu0 0.0
        %838 = vmatpush.xpose.msra.mxu0 0.0
        %839 = vmatpush.xpose.msra.mxu0 0.0
        %840 = vmatpush.xpose.msra.mxu0 0.0
        %841 = vmatpush.xpose.msra.mxu0 0.0
        %842 = vmatpush.xpose.msra.mxu0 0.0
        %843 = vmatpush.xpose.msra.mxu0 0.0
        %844 = vmatpush.xpose.msra.mxu0 0.0
        %845 = vmatpush.xpose.msra.mxu0 0.0
        %846 = vmatpush.xpose.msra.mxu0 0.0
        %847 = vmatpush.xpose.msra.mxu0 0.0
        %848 = vmatpush.xpose.msra.mxu0 0.0
        %849 = vmatpush.xpose.msra.mxu0 0.0
        %850 = vmatpush.xpose.msra.mxu0 0.0
        %v851 = vand.u32 %v649, 4294901760
        %852 = vmatpush.xpose.msra.mxu0 %v851
        %v853 = vand.u32 %v461, 4294901760
        %v854 = vsub.f32 %v461, %v853
        %v855 = vand.u32 %v854, 4294901760
        %v856 = vsub.f32 %v854, %v855
        %v857 = vand.u32 %v856, 4294901760
        %858 = vmatmul.f32.gmra.mxu0 %v857
        %v859 = vpop.f32.mrf.mxu0
        %v860 = vadd.f32 0.0, %v859
        %861 = vdwg.mxu0
        %862 = vmatpush.xpose.msra.mxu0 0.0
        %863 = vmatpush.xpose.msra.mxu0 0.0
        %864 = vmatpush.xpose.msra.mxu0 0.0
        %865 = vmatpush.xpose.msra.mxu0 0.0
        %866 = vmatpush.xpose.msra.mxu0 0.0
        %867 = vmatpush.xpose.msra.mxu0 0.0
        %868 = vmatpush.xpose.msra.mxu0 0.0
        %869 = vmatpush.xpose.msra.mxu0 0.0
        %870 = vmatpush.xpose.msra.mxu0 0.0
        %871 = vmatpush.xpose.msra.mxu0 0.0
        %872 = vmatpush.xpose.msra.mxu0 0.0
        %873 = vmatpush.xpose.msra.mxu0 0.0
        %874 = vmatpush.xpose.msra.mxu0 0.0
        %875 = vmatpush.xpose.msra.mxu0 0.0
        %876 = vmatpush.xpose.msra.mxu0 0.0
        %v877 = vand.u32 %v649, 4294901760
        %v878 = vsub.f32 %v649, %v877
        %v879 = vand.u32 %v878, 4294901760
        %v880 = vsub.f32 %v878, %v879
        %v881 = vand.u32 %v880, 4294901760
        %882 = vmatpush.xpose.msra.mxu0 %v881
        %v883 = vand.u32 %v461, 4294901760
        %884 = vmatmul.f32.gmra.mxu0 %v883
        %v885 = vpop.f32.mrf.mxu0
        %v886 = vadd.f32 %v860, %v885
        %887 = vdwg.mxu0
        %888 = vmatpush.xpose.msra.mxu0 0.0
        %889 = vmatpush.xpose.msra.mxu0 0.0
        %890 = vmatpush.xpose.msra.mxu0 0.0
        %891 = vmatpush.xpose.msra.mxu0 0.0
        %892 = vmatpush.xpose.msra.mxu0 0.0
        %893 = vmatpush.xpose.msra.mxu0 0.0
        %894 = vmatpush.xpose.msra.mxu0 0.0
        %895 = vmatpush.xpose.msra.mxu0 0.0
        %896 = vmatpush.xpose.msra.mxu0 0.0
        %897 = vmatpush.xpose.msra.mxu0 0.0
        %898 = vmatpush.xpose.msra.mxu0 0.0
        %899 = vmatpush.xpose.msra.mxu0 0.0
        %900 = vmatpush.xpose.msra.mxu0 0.0
        %901 = vmatpush.xpose.msra.mxu0 0.0
        %902 = vmatpush.xpose.msra.mxu0 0.0
        %v903 = vand.u32 %v649, 4294901760
        %v904 = vsub.f32 %v649, %v903
        %905 = vmatpush.xpose.msra.mxu0 %v904
        %v906 = vand.u32 %v461, 4294901760
        %v907 = vsub.f32 %v461, %v906
        %908 = vmatmul.f32.gmra.mxu0 %v907
        %v909 = vpop.f32.mrf.mxu0
        %v910 = vadd.f32 %v886, %v909
        %911 = vdwg.mxu0
        %912 = vmatpush.xpose.msra.mxu0 0.0
        %913 = vmatpush.xpose.msra.mxu0 0.0
        %914 = vmatpush.xpose.msra.mxu0 0.0
        %915 = vmatpush.xpose.msra.mxu0 0.0
        %916 = vmatpush.xpose.msra.mxu0 0.0
        %917 = vmatpush.xpose.msra.mxu0 0.0
        %918 = vmatpush.xpose.msra.mxu0 0.0
        %919 = vmatpush.xpose.msra.mxu0 0.0
        %920 = vmatpush.xpose.msra.mxu0 0.0
        %921 = vmatpush.xpose.msra.mxu0 0.0
        %922 = vmatpush.xpose.msra.mxu0 0.0
        %923 = vmatpush.xpose.msra.mxu0 0.0
        %924 = vmatpush.xpose.msra.mxu0 0.0
        %925 = vmatpush.xpose.msra.mxu0 0.0
        %926 = vmatpush.xpose.msra.mxu0 0.0
        %v927 = vand.u32 %v649, 4294901760
        %928 = vmatpush.xpose.msra.mxu0 %v927
        %v929 = vand.u32 %v461, 4294901760
        %v930 = vsub.f32 %v461, %v929
        %v931 = vand.u32 %v930, 4294901760
        %932 = vmatmul.f32.gmra.mxu0 %v931
        %v933 = vpop.f32.mrf.mxu0
        %v934 = vadd.f32 %v910, %v933
        %935 = vdwg.mxu0
        %936 = vmatpush.xpose.msra.mxu0 0.0
        %937 = vmatpush.xpose.msra.mxu0 0.0
        %938 = vmatpush.xpose.msra.mxu0 0.0
        %939 = vmatpush.xpose.msra.mxu0 0.0
        %940 = vmatpush.xpose.msra.mxu0 0.0
        %941 = vmatpush.xpose.msra.mxu0 0.0
        %942 = vmatpush.xpose.msra.mxu0 0.0
        %943 = vmatpush.xpose.msra.mxu0 0.0
        %944 = vmatpush.xpose.msra.mxu0 0.0
        %945 = vmatpush.xpose.msra.mxu0 0.0
        %946 = vmatpush.xpose.msra.mxu0 0.0
        %947 = vmatpush.xpose.msra.mxu0 0.0
        %948 = vmatpush.xpose.msra.mxu0 0.0
        %949 = vmatpush.xpose.msra.mxu0 0.0
        %950 = vmatpush.xpose.msra.mxu0 0.0
        %v951 = vand.u32 %v649, 4294901760
        %v952 = vsub.f32 %v649, %v951
        %v953 = vand.u32 %v952, 4294901760
        %954 = vmatpush.xpose.msra.mxu0 %v953
        %v955 = vand.u32 %v461, 4294901760
        %956 = vmatmul.f32.gmra.mxu0 %v955
        %v957 = vpop.f32.mrf.mxu0
        %v958 = vadd.f32 %v934, %v957
        %959 = vdwg.mxu0
        %960 = vmatpush.xpose.msra.mxu0 0.0
        %961 = vmatpush.xpose.msra.mxu0 0.0
        %962 = vmatpush.xpose.msra.mxu0 0.0
        %963 = vmatpush.xpose.msra.mxu0 0.0
        %964 = vmatpush.xpose.msra.mxu0 0.0
        %965 = vmatpush.xpose.msra.mxu0 0.0
        %966 = vmatpush.xpose.msra.mxu0 0.0
        %967 = vmatpush.xpose.msra.mxu0 0.0
        %968 = vmatpush.xpose.msra.mxu0 0.0
        %969 = vmatpush.xpose.msra.mxu0 0.0
        %970 = vmatpush.xpose.msra.mxu0 0.0
        %971 = vmatpush.xpose.msra.mxu0 0.0
        %972 = vmatpush.xpose.msra.mxu0 0.0
        %973 = vmatpush.xpose.msra.mxu0 0.0
        %974 = vmatpush.xpose.msra.mxu0 0.0
        %v975 = vand.u32 %v649, 4294901760
        %976 = vmatpush.xpose.msra.mxu0 %v975
        %v977 = vand.u32 %v461, 4294901760
        %978 = vmatmul.f32.gmra.mxu0 %v977
        %v979 = vpop.f32.mrf.mxu0
        %v980 = vadd.f32 %v958, %v979
        %981 = vdwg.mxu0
        %v982 = vlaneseq
        %v983 = vshrl.u32 %v982, 7
        %s984 = smul.u32 %s28, 8
        %v985 = vstv %s984
        %v986 = vadd.s32 %v983, %v985
        %v987 = vlaneseq
        %v988 = vand.u32 %v987, 127
        %vm989 = vcmp.le.s32.totalorder %v988, %v986
        %v990 = vsel %vm989, %v980, -1e+30
        %vm991 = vcmask 64512
        %v992 = vsel %vm991, %v990, -inf
        %993 = vmax.xlane.f32.xlu0 %v992
        %v994 = vpop.xlane.xlu0 %993
        %v995 = vsub.f32 %v990, %v994
        %v996 = vmul.f32 %v995, 1.442695
        %v997 = vpow.pop %v996
        %v998 = vsel %vm991, %v997, 0.0
        %999 = vadd.xlane.f32.xlu0 %v998
        %v1000 = vpop.xlane.xlu0 %999
        %v1001 = vrcp.pop %v1000
        %v1002 = vmul.f32 %v1000, %v1001
        %v1003 = vsub.f32 1.0, %v1002
        %v1004 = vmul.f32 %v1001, %v1003
        %v1005 = vadd.f32 %v1001, %v1004
        %vm1006 = vweird.f32 %v1000
        %vm1007 = vweird.f32 %v1001
        %vm1008 = vmor %vm1006, %vm1007
        %v1009 = vsel %vm1008, %v1001, %v1005
        %v1010 = vand.u32 2147483647, %v1000
        %vm1011 = vcmp.eq.f32.partialorder %v1010, 8.507059e+37
        %v1012 = vand.u32 %v1000, 2147483648
        %v1013 = vor.u32 1.1754944e-38, %v1012
        %v1014 = vsel %vm1011, %v1013, %v1009
        %v1015 = vmul.f32 %v997, %v1014
        %v1017 = vsel %vm991, %v1015, 0
        %1019 = vmatpush.msra.mxu0 0.0
        %1020 = vmatpush.msra.mxu0 0.0
        %1021 = vmatpush.msra.mxu0 0.0
        %1022 = vmatpush.msra.mxu0 0.0
        %1023 = vmatpush.msra.mxu0 0.0
        %1024 = vmatpush.msra.mxu0 0.0
        %1025 = vmatpush.msra.mxu0 0.0
        %1026 = vmatpush.msra.mxu0 0.0
        %1027 = vmatpush.msra.mxu0 0.0
        %1028 = vmatpush.msra.mxu0 0.0
        %1029 = vmatpush.msra.mxu0 0.0
        %1030 = vmatpush.msra.mxu0 0.0
        %1031 = vmatpush.msra.mxu0 0.0
        %1032 = vmatpush.msra.mxu0 0.0
        %1033 = vmatpush.msra.mxu0 0.0
        %v1034 = vand.u32 %v834, 4294901760
        %1035 = vmatpush.msra.mxu0 %v1034
        %v1036 = vand.u32 %v1017, 4294901760
        %v1037 = vsub.f32 %v1017, %v1036
        %v1038 = vand.u32 %v1037, 4294901760
        %v1039 = vsub.f32 %v1037, %v1038
        %v1040 = vand.u32 %v1039, 4294901760
        %1041 = vmatmul.f32.gmra.mxu0 %v1040
        %v1042 = vpop.f32.mrf.mxu0
        %v1043 = vadd.f32 0.0, %v1042
        %1044 = vdwg.mxu0
        %1045 = vmatpush.msra.mxu0 0.0
        %1046 = vmatpush.msra.mxu0 0.0
        %1047 = vmatpush.msra.mxu0 0.0
        %1048 = vmatpush.msra.mxu0 0.0
        %1049 = vmatpush.msra.mxu0 0.0
        %1050 = vmatpush.msra.mxu0 0.0
        %1051 = vmatpush.msra.mxu0 0.0
        %1052 = vmatpush.msra.mxu0 0.0
        %1053 = vmatpush.msra.mxu0 0.0
        %1054 = vmatpush.msra.mxu0 0.0
        %1055 = vmatpush.msra.mxu0 0.0
        %1056 = vmatpush.msra.mxu0 0.0
        %1057 = vmatpush.msra.mxu0 0.0
        %1058 = vmatpush.msra.mxu0 0.0
        %1059 = vmatpush.msra.mxu0 0.0
        %v1060 = vand.u32 %v834, 4294901760
        %v1061 = vsub.f32 %v834, %v1060
        %v1062 = vand.u32 %v1061, 4294901760
        %v1063 = vsub.f32 %v1061, %v1062
        %v1064 = vand.u32 %v1063, 4294901760
        %1065 = vmatpush.msra.mxu0 %v1064
        %v1066 = vand.u32 %v1017, 4294901760
        %1067 = vmatmul.f32.gmra.mxu0 %v1066
        %v1068 = vpop.f32.mrf.mxu0
        %v1069 = vadd.f32 %v1043, %v1068
        %1070 = vdwg.mxu0
        %1071 = vmatpush.msra.mxu0 0.0
        %1072 = vmatpush.msra.mxu0 0.0
        %1073 = vmatpush.msra.mxu0 0.0
        %1074 = vmatpush.msra.mxu0 0.0
        %1075 = vmatpush.msra.mxu0 0.0
        %1076 = vmatpush.msra.mxu0 0.0
        %1077 = vmatpush.msra.mxu0 0.0
        %1078 = vmatpush.msra.mxu0 0.0
        %1079 = vmatpush.msra.mxu0 0.0
        %1080 = vmatpush.msra.mxu0 0.0
        %1081 = vmatpush.msra.mxu0 0.0
        %1082 = vmatpush.msra.mxu0 0.0
        %1083 = vmatpush.msra.mxu0 0.0
        %1084 = vmatpush.msra.mxu0 0.0
        %1085 = vmatpush.msra.mxu0 0.0
        %v1086 = vand.u32 %v834, 4294901760
        %v1087 = vsub.f32 %v834, %v1086
        %1088 = vmatpush.msra.mxu0 %v1087
        %v1089 = vand.u32 %v1017, 4294901760
        %v1090 = vsub.f32 %v1017, %v1089
        %1091 = vmatmul.f32.gmra.mxu0 %v1090
        %v1092 = vpop.f32.mrf.mxu0
        %v1093 = vadd.f32 %v1069, %v1092
        %1094 = vdwg.mxu0
        %1095 = vmatpush.msra.mxu0 0.0
        %1096 = vmatpush.msra.mxu0 0.0
        %1097 = vmatpush.msra.mxu0 0.0
        %1098 = vmatpush.msra.mxu0 0.0
        %1099 = vmatpush.msra.mxu0 0.0
        %1100 = vmatpush.msra.mxu0 0.0
        %1101 = vmatpush.msra.mxu0 0.0
        %1102 = vmatpush.msra.mxu0 0.0
        %1103 = vmatpush.msra.mxu0 0.0
        %1104 = vmatpush.msra.mxu0 0.0
        %1105 = vmatpush.msra.mxu0 0.0
        %1106 = vmatpush.msra.mxu0 0.0
        %1107 = vmatpush.msra.mxu0 0.0
        %1108 = vmatpush.msra.mxu0 0.0
        %1109 = vmatpush.msra.mxu0 0.0
        %v1110 = vand.u32 %v834, 4294901760
        %1111 = vmatpush.msra.mxu0 %v1110
        %v1112 = vand.u32 %v1017, 4294901760
        %v1113 = vsub.f32 %v1017, %v1112
        %v1114 = vand.u32 %v1113, 4294901760
        %1115 = vmatmul.f32.gmra.mxu0 %v1114
        %v1116 = vpop.f32.mrf.mxu0
        %v1117 = vadd.f32 %v1093, %v1116
        %1118 = vdwg.mxu0
        %1119 = vmatpush.msra.mxu0 0.0
        %1120 = vmatpush.msra.mxu0 0.0
        %1121 = vmatpush.msra.mxu0 0.0
        %1122 = vmatpush.msra.mxu0 0.0
        %1123 = vmatpush.msra.mxu0 0.0
        %1124 = vmatpush.msra.mxu0 0.0
        %1125 = vmatpush.msra.mxu0 0.0
        %1126 = vmatpush.msra.mxu0 0.0
        %1127 = vmatpush.msra.mxu0 0.0
        %1128 = vmatpush.msra.mxu0 0.0
        %1129 = vmatpush.msra.mxu0 0.0
        %1130 = vmatpush.msra.mxu0 0.0
        %1131 = vmatpush.msra.mxu0 0.0
        %1132 = vmatpush.msra.mxu0 0.0
        %1133 = vmatpush.msra.mxu0 0.0
        %v1134 = vand.u32 %v834, 4294901760
        %v1135 = vsub.f32 %v834, %v1134
        %v1136 = vand.u32 %v1135, 4294901760
        %1137 = vmatpush.msra.mxu0 %v1136
        %v1138 = vand.u32 %v1017, 4294901760
        %1139 = vmatmul.f32.gmra.mxu0 %v1138
        %v1140 = vpop.f32.mrf.mxu0
        %v1141 = vadd.f32 %v1117, %v1140
        %1142 = vdwg.mxu0
        %1143 = vmatpush.msra.mxu0 0.0
        %1144 = vmatpush.msra.mxu0 0.0
        %1145 = vmatpush.msra.mxu0 0.0
        %1146 = vmatpush.msra.mxu0 0.0
        %1147 = vmatpush.msra.mxu0 0.0
        %1148 = vmatpush.msra.mxu0 0.0
        %1149 = vmatpush.msra.mxu0 0.0
        %1150 = vmatpush.msra.mxu0 0.0
        %1151 = vmatpush.msra.mxu0 0.0
        %1152 = vmatpush.msra.mxu0 0.0
        %1153 = vmatpush.msra.mxu0 0.0
        %1154 = vmatpush.msra.mxu0 0.0
        %1155 = vmatpush.msra.mxu0 0.0
        %1156 = vmatpush.msra.mxu0 0.0
        %1157 = vmatpush.msra.mxu0 0.0
        %v1158 = vand.u32 %v834, 4294901760
        %1159 = vmatpush.msra.mxu0 %v1158
        %v1160 = vand.u32 %v1017, 4294901760
        %1161 = vmatmul.f32.gmra.mxu0 %v1160
        %v1162 = vpop.f32.mrf.mxu0
        %v1163 = vadd.f32 %v1141, %v1162
        %1164 = vdwg.mxu0
        %1165 = vst [vmem:[%s259] sm:$0xff] %v1163
        %s1166 = sand.u32 %s120, 1
        %s1167 = scalar_lea.sflag [#allocation4], %s1166
        %s1168 = sand.u32 %s120, 1
        %s1169 = smul.addr %s1168, 8
        %s1170 = scalar_lea.vmem [#allocation8], %s1169
        // Predicated region
        $region45: #{tpu_custom_call.1} parent=31 // pred_check
          %p1171 = pneg %p130
        $region46: #{tpu_custom_call.1} parent=31 // pred_check_branch
          %1173 = sbr.rel (%p1171) target = $region48
        $region47: #{tpu_custom_call.1} parent=31 // pred_region
          %1175 = vsyncadd %s1167, 0
          %s1176 = sadd.s32 %s28, %s27
          %s1177 = smul.addr %s1176, 8
          %s1178 = scalar_lea.hbm %s3, %s1177
          %s1180 = sshll.u32 %s1170, 4
          %s1181 = int_to_ptr.vmem [resolvable:$true] %s1180
          %s1182 = sshll.u32 %s1178, 4
          %s1183 = int_to_ptr.hbm [resolvable:$true] %s1182
          %1185 = dma.vmem_to_hbm [thread:$0]  %s1181, 128, %s1183, %s1167
        $region48: #{tpu_custom_call.1} parent=31 // pred_fallthru
          _
      $region32: #{tpu_custom_call.1} parent=5 // pred_fallthru
        _
      %p1186 = scmp.le.s32.totalorder 2, %s18
      // Predicated region
      $region49: #{tpu_custom_call.1} parent=5 // pred_check
        %p1187 = pneg %p1186
      $region50: #{tpu_custom_call.1} parent=5 // pred_check_branch
        %1189 = sbr.rel (%p1187) target = $region52
      $region51: #{tpu_custom_call.1} parent=5 // pred_region
        %s1190 = ssub.s32 %s18, 2
        // Predicated region
        $region53: #{tpu_custom_call.1} parent=51 // pred_check
          %p1191 = pneg %p136
        $region54: #{tpu_custom_call.1} parent=51 // pred_check_branch
          %1193 = sbr.rel (%p1191) target = $region56
        $region55: #{tpu_custom_call.1} parent=51 // pred_region
          %s1194 = sand.u32 %s121, 1
          %s1195 = scalar_lea.sflag [#allocation4], %s1194
          %s1196 = sand.u32 %s121, 1
          %s1197 = smul.addr %s1196, 8
          %s1198 = scalar_lea.vmem [#allocation8], %s1197
          %1200 = dma.done %s1195, 128
        $region56: #{tpu_custom_call.1} parent=51 // pred_fallthru
          _
      $region52: #{tpu_custom_call.1} parent=5 // pred_fallthru
        _
    $region6: #{tpu_custom_call.1} parent=1 // loop_footer
      %s22 = sadd.s32 1, %s18
    $region7: #{tpu_custom_call.1} parent=1 // loop_footer_branch
      %17 = sbr.rel target = $region3
    $region8: #{tpu_custom_call.1} parent=1 // loop_exit
      _
    %1201 = vsyncpa [#allocation3], 1
    %s1202 = scalar_lea.sflag [#allocation3], 1
    %1203 = vsyncpa %s1202, 1
    %1204 = vsyncpa [#allocation6], 1
    %s1205 = scalar_lea.sflag [#allocation6], 1
    %1206 = vsyncpa %s1205, 1
    %1207 = vsyncpa [#allocation4], 1
    %s1208 = scalar_lea.sflag [#allocation4], 1
    %1209 = vsyncpa %s1208, 1

</llo_original>
